<compile_context>
chip_gen: v6e
topology: v6e:2x2x1
jax: 0.10.0
libtpu: 0.0.40
codegen_flags: <defaults>
</compile_context>

<pallas_src>
import functools
import math

import jax
import jax.numpy as jnp
from jax.experimental import pallas as pl
from jax.experimental.pallas import tpu as pltpu

LN_EPS = 1e-12


def _vmem_limit_bytes():
    """Scoped-VMEM limit: ~half of physical, clamped to [32 MiB, 64 MiB]."""
    try:
        cap = int(pltpu.get_tpu_info().vmem_capacity_bytes)
    except Exception:
        cap = 64 * 1024 * 1024  # conservative fallback -> 32 MiB scoped limit
    return int(max(32 * 1024 * 1024, min(64 * 1024 * 1024, cap // 2)))


VMEM_LIMIT = _vmem_limit_bytes()
_BIG_VMEM = VMEM_LIMIT >= 64 * 1024 * 1024          # v5e / v6e (128 MiB physical)

_TOK_PREFS = ((512,) if _BIG_VMEM else ()) + (256, 128, 64, 32, 16, 8)
_LANE_PREFS = (1536, 1024, 768, 512, 384, 256, 128)
_ATT_Q_PREFS = (256, 128, 64, 32, 16, 8)
_ATT_K_PREFS = (512, 256, 128, 64, 32, 16, 8)


def _tile(dim, prefs):
    """Largest preferred tile that evenly divides `dim`, else the full dim."""
    for t in prefs:
        if dim >= t and dim % t == 0:
            return t
    return dim


# ----------------------------------------------------------------------------- kernels
def _matmul_bias_kernel(x_ref, w_ref, b_ref, o_ref, acc_ref, *, activation):
    k = pl.program_id(2)

    @pl.when(k == 0)
    def _():
        acc_ref[...] = jnp.zeros_like(acc_ref)

    acc_ref[...] += jnp.dot(x_ref[...], w_ref[...],
                            preferred_element_type=jnp.float32)

    @pl.when(k == pl.num_programs(2) - 1)
    def _():
        y = acc_ref[...] + b_ref[...]
        if activation == "gelu":
            # TODO(synk): tanh-approx GELU; HF BERT default is exact erf GELU.
            c = 0.7978845608028654
            y = 0.5 * y * (1.0 + jnp.tanh(c * (y + 0.044715 * y * y * y)))
        o_ref[...] = y.astype(o_ref.dtype)


def _matmul_res_ln_kernel(x_ref, w_ref, b_ref, r_ref, g_ref, bt_ref,
                          o_ref, acc_ref, *, eps):
    k = pl.program_id(1)

    @pl.when(k == 0)
    def _():
        acc_ref[...] = jnp.zeros_like(acc_ref)

    acc_ref[...] += jnp.dot(x_ref[...], w_ref[...],
                            preferred_element_type=jnp.float32)

    @pl.when(k == pl.num_programs(1) - 1)
    def _():
        h = acc_ref[...] + b_ref[...] + r_ref[...].astype(jnp.float32)
        mu = jnp.mean(h, axis=-1, keepdims=True)
        d = h - mu
        var = jnp.mean(d * d, axis=-1, keepdims=True)
        o_ref[...] = (d * jax.lax.rsqrt(var + eps) * g_ref[...]
                      + bt_ref[...]).astype(o_ref.dtype)


def _flash_attn_kernel(q_ref, k_ref, v_ref, m_ref, o_ref,
                       m_sc, l_sc, acc_sc, *, scale):
    kv = pl.program_id(2)

    @pl.when(kv == 0)
    def _():
        m_sc[...] = jnp.full_like(m_sc, -jnp.inf)
        l_sc[...] = jnp.zeros_like(l_sc)
        acc_sc[...] = jnp.zeros_like(acc_sc)

    q = q_ref[0]                                                  # (hb, tq, dH)
    k = k_ref[0]                                                  # (hb, tk, dH)
    s = jnp.einsum("hqd,hkd->hqk", q, k,
                   preferred_element_type=jnp.float32)
    s = s * scale + m_ref[0]                                      # (1, tk) additive mask
    m_new = jnp.maximum(m_sc[...], jnp.max(s, axis=-1, keepdims=True))
    alpha = jnp.exp(m_sc[...] - m_new)
    p = jnp.exp(s - m_new)
    l_sc[...] = alpha * l_sc[...] + jnp.sum(p, axis=-1, keepdims=True)
    acc_sc[...] = alpha * acc_sc[...] + jnp.einsum(
        "hqk,hkd->hqd", p.astype(v_ref.dtype), v_ref[0],
        preferred_element_type=jnp.float32)
    m_sc[...] = m_new

    @pl.when(kv == pl.num_programs(2) - 1)
    def _():
        o_ref[0] = (acc_sc[...]
                    * pl.reciprocal(l_sc[...], approx=True)).astype(o_ref.dtype)


def _emb_add_ln_kernel(w_ref, p_ref, t_ref, g_ref, b_ref, o_ref, *, eps):
    h = w_ref[...] + p_ref[...] + t_ref[...]
    mu = jnp.mean(h, axis=-1, keepdims=True)
    d = h - mu
    var = jnp.mean(d * d, axis=-1, keepdims=True)
    o_ref[...] = (d * jax.lax.rsqrt(var + eps) * g_ref[...]
                  + b_ref[...]).astype(o_ref.dtype)


def _cls_ce_kernel(h_ref, w_ref, b_ref, lab_ref, logits_ref, loss_ref,
                   *, num_labels, inv_rows):
    i = pl.program_id(0)

    logits = jnp.dot(h_ref[...], w_ref[...],
                     preferred_element_type=jnp.float32) + b_ref[...]
    logits_ref[...] = logits                                       # (tm, Lp) lane-dense

    col = jax.lax.broadcasted_iota(jnp.int32, logits.shape, 1)
    masked = jnp.where(col < num_labels, logits, -1e30)            # kill padded labels
    m = jnp.max(masked, axis=-1, keepdims=True)
    lse = jnp.log(jnp.sum(jnp.exp(masked - m), axis=-1, keepdims=True)) + m
    onehot = (col == lab_ref[...]).astype(jnp.float32)
    nll = lse - jnp.sum(onehot * masked, axis=-1, keepdims=True)   # (tm, 1)

    @pl.when(i == 0)
    def _():
        loss_ref[...] = jnp.zeros_like(loss_ref)

    loss_ref[...] += jnp.sum(nll, axis=(0, 1), keepdims=True) * inv_rows


# ----------------------------------------------------------------------------- wrappers
def linear(x, w, b, activation=None, out_dtype=jnp.bfloat16):
    """Tiled (M,N,K) matmul with bias (+ optional GELU) epilogue; bf16 inputs, f32 acc."""
    M, K = x.shape
    N = w.shape[1]
    tm = _tile(M, _TOK_PREFS)
    tn = _tile(N, _LANE_PREFS)
    tk = _tile(K, _LANE_PREFS)
    kern = functools.partial(_matmul_bias_kernel, activation=activation)
    cost = pl.CostEstimate(
        flops=2 * M * N * K,
        transcendentals=M * N if activation == "gelu" else 0,
        bytes_accessed=2 * (M * K + K * N + M * N),
    )
    return pl.pallas_call(
        kern,
        grid=(M // tm, N // tn, K // tk),
        in_specs=[
            pl.BlockSpec((tm, tk), lambda i, j, k: (i, k)),
            pl.BlockSpec((tk, tn), lambda i, j, k: (k, j)),
            pl.BlockSpec((1, tn), lambda i, j, k: (0, j)),
        ],
        out_specs=pl.BlockSpec((tm, tn), lambda i, j, k: (i, j)),
        out_shape=jax.ShapeDtypeStruct((M, N), out_dtype),
        scratch_shapes=[pltpu.VMEM((tm, tn), jnp.float32)],
        compiler_params=pltpu.CompilerParams(
            dimension_semantics=("parallel", "parallel", "arbitrary"),
            vmem_limit_bytes=VMEM_LIMIT,
        ),
        cost_estimate=cost,
    )(x.astype(jnp.bfloat16), w.astype(jnp.bfloat16),
      b.reshape(1, N).astype(jnp.float32))


def linear_residual_ln(x, w, b, res, gamma, beta):
    """Matmul + bias + residual + LayerNorm fused; emits bf16 (LN computed in f32)."""
    M, K = x.shape
    N = w.shape[1]
    tm = _tile(M, _TOK_PREFS)
    tk = _tile(K, _LANE_PREFS)
    kern = functools.partial(_matmul_res_ln_kernel, eps=LN_EPS)
    cost = pl.CostEstimate(
        flops=2 * M * N * K + 10 * M * N,
        transcendentals=M,
        bytes_accessed=2 * (M * K + K * N + 2 * M * N),
    )
    return pl.pallas_call(
        kern,
        grid=(M // tm, K // tk),
        in_specs=[
            pl.BlockSpec((tm, tk), lambda i, k: (i, k)),
            pl.BlockSpec((tk, N), lambda i, k: (k, 0)),
            pl.BlockSpec((1, N), lambda i, k: (0, 0)),
            pl.BlockSpec((tm, N), lambda i, k: (i, 0)),
            pl.BlockSpec((1, N), lambda i, k: (0, 0)),
            pl.BlockSpec((1, N), lambda i, k: (0, 0)),
        ],
        out_specs=pl.BlockSpec((tm, N), lambda i, k: (i, 0)),
        out_shape=jax.ShapeDtypeStruct((M, N), jnp.bfloat16),
        scratch_shapes=[pltpu.VMEM((tm, N), jnp.float32)],
        compiler_params=pltpu.CompilerParams(
            dimension_semantics=("parallel", "arbitrary"),
            vmem_limit_bytes=VMEM_LIMIT,
        ),
        cost_estimate=cost,
    )(x.astype(jnp.bfloat16), w.astype(jnp.bfloat16),
      b.reshape(1, N).astype(jnp.float32),
      res.astype(jnp.bfloat16),
      gamma.reshape(1, N).astype(jnp.float32),
      beta.reshape(1, N).astype(jnp.float32))


def flash_attention(q, k, v, add_mask):
    """Head-batched flash attention. q/k/v: (B, nH, S, dH); add_mask: (B, 1, S)."""
    B, nH, S, dH = q.shape
    hb = 1
    for cand in (4, 3, 2, 1):          # 2-4 heads per grid step (amortize step overhead)
        if nH % cand == 0:
            hb = cand
            break
    ng = nH // hb
    tq = _tile(S, _ATT_Q_PREFS)
    tk = _tile(S, _ATT_K_PREFS)
    kern = functools.partial(_flash_attn_kernel, scale=1.0 / math.sqrt(dH))
    return pl.pallas_call(
        kern,
        grid=(B * ng, S // tq, S // tk),
        in_specs=[
            pl.BlockSpec((1, hb, tq, dH), lambda g, qi, ki: (g // ng, g % ng, qi, 0)),
            pl.BlockSpec((1, hb, tk, dH), lambda g, qi, ki: (g // ng, g % ng, ki, 0)),
            pl.BlockSpec((1, hb, tk, dH), lambda g, qi, ki: (g // ng, g % ng, ki, 0)),
            # mask is (B, 1, S): per-head broadcast happens via the index_map, not in XLA
            pl.BlockSpec((1, 1, tk), lambda g, qi, ki: (g // ng, 0, ki)),
        ],
        out_specs=pl.BlockSpec((1, hb, tq, dH),
                               lambda g, qi, ki: (g // ng, g % ng, qi, 0)),
        out_shape=jax.ShapeDtypeStruct((B, nH, S, dH), jnp.bfloat16),
        scratch_shapes=[
            pltpu.VMEM((hb, tq, 1), jnp.float32),     # running max
            pltpu.VMEM((hb, tq, 1), jnp.float32),     # running sum
            pltpu.VMEM((hb, tq, dH), jnp.float32),    # accumulator
        ],
        compiler_params=pltpu.CompilerParams(
            dimension_semantics=("parallel", "parallel", "arbitrary"),
            vmem_limit_bytes=VMEM_LIMIT,
        ),
    )(q.astype(jnp.bfloat16), k.astype(jnp.bfloat16),
      v.astype(jnp.bfloat16), add_mask.astype(jnp.float32))


def embed_add_ln(word, pos, typ, gamma, beta, B, S):
    """word/type embeddings (M,H) + positional embeddings (S,H) + LayerNorm -> bf16."""
    M, H = word.shape
    tm = _tile(S, _TOK_PREFS)          # tile must not cross sequence boundaries (pos idx)
    nsb = S // tm
    kern = functools.partial(_emb_add_ln_kernel, eps=LN_EPS)
    return pl.pallas_call(
        kern,
        grid=(M // tm,),
        in_specs=[
            pl.BlockSpec((tm, H), lambda i: (i, 0)),
            pl.BlockSpec((tm, H), lambda i: (i % nsb, 0)),   # positional, reused per batch
            pl.BlockSpec((tm, H), lambda i: (i, 0)),
            pl.BlockSpec((1, H), lambda i: (0, 0)),
            pl.BlockSpec((1, H), lambda i: (0, 0)),
        ],
        out_specs=pl.BlockSpec((tm, H), lambda i: (i, 0)),
        out_shape=jax.ShapeDtypeStruct((M, H), jnp.bfloat16),
        compiler_params=pltpu.CompilerParams(
            dimension_semantics=("parallel",),
            vmem_limit_bytes=VMEM_LIMIT,
        ),
    )(word.astype(jnp.float32), pos.astype(jnp.float32), typ.astype(jnp.float32),
      gamma.reshape(1, H).astype(jnp.float32),
      beta.reshape(1, H).astype(jnp.float32))


def classifier_ce(h, w, b, labels):
    """Fused token classifier + CrossEntropy (mean over all tokens, like nn.CrossEntropyLoss).

    The label dim is zero-padded to a 128-lane multiple for lane-dense stores; the padded
    columns are masked to -1e30 before the LSE so the loss is exact.
    """
    M, H = h.shape
    L = w.shape[1]
    Lp = max(128, ((L + 127) // 128) * 128)
    w_pad = jnp.pad(w.astype(jnp.bfloat16), ((0, 0), (0, Lp - L)))
    b_pad = jnp.pad(b.astype(jnp.float32), (0, Lp - L)).reshape(1, Lp)
    tm = _tile(M, _TOK_PREFS)
    kern = functools.partial(_cls_ce_kernel, num_labels=L, inv_rows=1.0 / M)
    logits, loss = pl.pallas_call(
        kern,
        grid=(M // tm,),
        in_specs=[
            pl.BlockSpec((tm, H), lambda i: (i, 0)),
            pl.BlockSpec((H, Lp), lambda i: (0, 0)),
            pl.BlockSpec((1, Lp), lambda i: (0, 0)),
            pl.BlockSpec((tm, 1), lambda i: (i, 0)),
        ],
        out_specs=(
            pl.BlockSpec((tm, Lp), lambda i: (i, 0)),
            pl.BlockSpec((1, 1), lambda i: (0, 0)),   # loss resident across the grid
        ),
        out_shape=(
            jax.ShapeDtypeStruct((M, Lp), jnp.float32),
            jax.ShapeDtypeStruct((1, 1), jnp.float32),
        ),
        compiler_params=pltpu.CompilerParams(
            dimension_semantics=("arbitrary",),
            vmem_limit_bytes=VMEM_LIMIT,
        ),
    )(h.astype(jnp.bfloat16), w_pad, b_pad, labels.reshape(M, 1).astype(jnp.int32))
    return loss[0, 0], logits[:, :L]


# ----------------------------------------------------------------------------- model
def init_params(key, cfg):
    H, I, L = cfg["hidden_size"], cfg["intermediate_size"], cfg["num_labels"]

    def nrm(k, shape, dtype=jnp.float32):
        return (jax.random.normal(k, shape, jnp.float32) * 0.02).astype(dtype)

    keys = iter(jax.random.split(key, 8 + 8 * cfg["num_layers"]))
    params = dict(
        word_emb=nrm(next(keys), (cfg["vocab_size"], H)),
        pos_emb=nrm(next(keys), (cfg["max_position"], H)),
        type_emb=nrm(next(keys), (cfg["type_vocab_size"], H)),
        emb_ln_g=jnp.ones((H,), jnp.float32),
        emb_ln_b=jnp.zeros((H,), jnp.float32),
        cls_w=nrm(next(keys), (H, L), jnp.bfloat16),
        cls_b=jnp.zeros((L,), jnp.float32),
        layers=[],
    )
    for _ in range(cfg["num_layers"]):
        params["layers"].append(dict(
            qkv_w=nrm(next(keys), (H, 3 * H), jnp.bfloat16),   # fused Q|K|V projection
            qkv_b=jnp.zeros((3 * H,), jnp.float32),
            ao_w=nrm(next(keys), (H, H), jnp.bfloat16),
            ao_b=jnp.zeros((H,), jnp.float32),
            ln1_g=jnp.ones((H,), jnp.float32),
            ln1_b=jnp.zeros((H,), jnp.float32),
            i_w=nrm(next(keys), (H, I), jnp.bfloat16),
            i_b=jnp.zeros((I,), jnp.float32),
            o_w=nrm(next(keys), (I, H), jnp.bfloat16),
            o_b=jnp.zeros((H,), jnp.float32),
            ln2_g=jnp.ones((H,), jnp.float32),
            ln2_b=jnp.zeros((H,), jnp.float32),
        ))
    return params


def bert_layer(h, addm, p, B, S, nH, dH):
    H = nH * dH
    M = B * S

    # fused Q/K/V projection: one matmul against the concatenated (H, 3H) weight -> bf16
    qkv = linear(h, p["qkv_w"], p["qkv_b"], out_dtype=jnp.bfloat16)        # (M, 3H)
    q, k, v = jnp.split(qkv, 3, axis=-1)

    def split_heads(x):  # (M, H) -> (B, nH, S, dH)
        return x.reshape(B, S, nH, dH).transpose(0, 2, 1, 3)

    # TODO(synk): head split/merge transposes remain XLA glue; folding them into the GEMM
    # BlockSpecs forces dH-deep MXU contractions (4x MXU passes) which measures worse than
    # the transpose on MXU-bound v6e/v7x, so they are intentionally kept here.
    ctx = flash_attention(split_heads(q), split_heads(k), split_heads(v), addm)
    ctx = ctx.transpose(0, 2, 1, 3).reshape(M, H)                          # bf16

    # attention-output linear + residual + LayerNorm fused -> bf16
    h = linear_residual_ln(ctx, p["ao_w"], p["ao_b"], h, p["ln1_g"], p["ln1_b"])

    # FFN: intermediate linear with fused GELU, then output linear + residual + LN fused
    inter = linear(h, p["i_w"], p["i_b"], activation="gelu", out_dtype=jnp.bfloat16)
    h = linear_residual_ln(inter, p["o_w"], p["o_b"], h, p["ln2_g"], p["ln2_b"])
    return h


def parsbert_forward(params, cfg, input_ids, attention_mask, token_type_ids, labels):
    B, S = input_ids.shape
    H = cfg["hidden_size"]
    nH = cfg["num_heads"]
    dH = H // nH
    L = cfg["num_labels"]
    M = B * S

    # --- embeddings: gathers are XLA glue; the 3-way add + LayerNorm is fused in Pallas ---
    word = params["word_emb"][input_ids].reshape(M, H)          # (M, H)
    pos = params["pos_emb"][:S]                                 # (S, H), indexed in-kernel
    typ = params["type_emb"][token_type_ids].reshape(M, H)      # (M, H)
    h = embed_add_ln(word, pos, typ, params["emb_ln_g"], params["emb_ln_b"], B, S)
    # dropout: identity (eval mode)

    # additive attention mask kept at (B, 1, S); per-head use is handled by the index_map
    addm = ((1.0 - attention_mask.astype(jnp.float32)) * -10000.0)[:, None, :]

    for lp in params["layers"]:
        h = bert_layer(h, addm, lp, B, S, nH, dH)

    # dropout: identity (eval mode); classifier + CrossEntropy fused in one kernel
    loss, logits = classifier_ce(h, params["cls_w"], params["cls_b"], labels.reshape(-1))
    # TODO(synk): CRF layer is instantiated in __init__ but unused in forward(); omitted.
    return loss, logits.reshape(B, S, L)


# ----------------------------------------------------------------------------- main
if __name__ == "__main__":
    cfg = dict(
        vocab_size=100,
        hidden_size=32,
        num_heads=2,
        num_layers=2,
        intermediate_size=64,
        max_position=16,
        type_vocab_size=2,
        num_labels=5,
    )
    B, S = 2, 8

    root = jax.random.PRNGKey(0)
    kp, k1, k2, k3 = jax.random.split(root, 4)

    params = init_params(kp, cfg)

    input_ids = jax.random.randint(k1, (B, S), 0, cfg["vocab_size"], dtype=jnp.int32)
    attention_mask = jnp.ones((B, S), jnp.int32).at[1, 6:].set(0)
    token_type_ids = jnp.zeros((B, S), jnp.int32)
    labels = jax.random.randint(k3, (B, S), 0, cfg["num_labels"], dtype=jnp.int32)

    loss, logits = parsbert_forward(
        params, cfg, input_ids, attention_mask, token_type_ids, labels
    )
    jax.block_until_ready((loss, logits))

    assert logits.shape == (B, S, cfg["num_labels"])
    assert bool(jnp.isfinite(loss))
    print("KERNEL_OK")
</pallas_src>

<mosaic_0001>
module attributes {stable_mosaic.version = 11 : i64} {
  func.func @_emb_add_ln_kernel(%arg0: i32, %arg1: memref<8x32xf32, #tpu.memory_space<vmem>>, %arg2: memref<8x32xf32, #tpu.memory_space<vmem>>, %arg3: memref<8x32xf32, #tpu.memory_space<vmem>>, %arg4: memref<1x32xf32, #tpu.memory_space<vmem>>, %arg5: memref<1x32xf32, #tpu.memory_space<vmem>>, %arg6: memref<8x32xbf16, #tpu.memory_space<vmem>>) attributes {dimension_semantics = [#tpu.dimension_semantics<parallel>], iteration_bounds = array<i64: 2>, scalar_prefetch = 0 : i64, scratch_operands = 0 : i64, tpu.core_type = #tpu.core_type<tc>, window_params = [{transform_indices = @transform_0, window_bounds = array<i64: 8, 32>}, {transform_indices = @transform_1, window_bounds = array<i64: 8, 32>}, {transform_indices = @transform_2, window_bounds = array<i64: 8, 32>}, {pipeline_mode = #tpu.pipeline_mode<synchronous>, transform_indices = @transform_3, window_bounds = array<i64: 1, 32>}, {pipeline_mode = #tpu.pipeline_mode<synchronous>, transform_indices = @transform_4, window_bounds = array<i64: 1, 32>}, {transform_indices = @transform_5, window_bounds = array<i64: 8, 32>}]} {
    %c0 = arith.constant 0 : index
    %c0_0 = arith.constant 0 : index
    %0 = vector.load %arg1[%c0, %c0_0] : memref<8x32xf32, #tpu.memory_space<vmem>>, vector<8x32xf32>
    %c0_1 = arith.constant 0 : index
    %c0_2 = arith.constant 0 : index
    %1 = vector.load %arg2[%c0_1, %c0_2] : memref<8x32xf32, #tpu.memory_space<vmem>>, vector<8x32xf32>
    %2 = arith.addf %0, %1 : vector<8x32xf32>
    %c0_3 = arith.constant 0 : index
    %c0_4 = arith.constant 0 : index
    %3 = vector.load %arg3[%c0_3, %c0_4] : memref<8x32xf32, #tpu.memory_space<vmem>>, vector<8x32xf32>
    %4 = arith.addf %2, %3 : vector<8x32xf32>
    %cst = arith.constant dense<0.000000e+00> : vector<8xf32>
    %5 = vector.multi_reduction <add>, %4, %cst [1] : vector<8x32xf32> to vector<8xf32>
    %6 = vector.shape_cast %5 : vector<8xf32> to vector<8x1xf32>
    %cst_5 = arith.constant 3.200000e+01 : f32
    %7 = vector.broadcast %cst_5 : f32 to vector<8x1xf32>
    %8 = arith.divf %6, %7 : vector<8x1xf32>
    %9 = vector.broadcast %8 : vector<8x1xf32> to vector<8x32xf32>
    %10 = arith.subf %4, %9 : vector<8x32xf32>
    %11 = arith.mulf %10, %10 : vector<8x32xf32>
    %cst_6 = arith.constant dense<0.000000e+00> : vector<8xf32>
    %12 = vector.multi_reduction <add>, %11, %cst_6 [1] : vector<8x32xf32> to vector<8xf32>
    %13 = vector.shape_cast %12 : vector<8xf32> to vector<8x1xf32>
    %cst_7 = arith.constant 3.200000e+01 : f32
    %14 = vector.broadcast %cst_7 : f32 to vector<8x1xf32>
    %15 = arith.divf %13, %14 : vector<8x1xf32>
    %cst_8 = arith.constant 9.99999996E-13 : f32
    %16 = vector.broadcast %cst_8 : f32 to vector<8x1xf32>
    %17 = arith.addf %15, %16 : vector<8x1xf32>
    %18 = math.rsqrt %17 : vector<8x1xf32>
    %19 = vector.broadcast %18 : vector<8x1xf32> to vector<8x32xf32>
    %20 = arith.mulf %10, %19 : vector<8x32xf32>
    %c0_9 = arith.constant 0 : index
    %c0_10 = arith.constant 0 : index
    %21 = vector.load %arg4[%c0_9, %c0_10] : memref<1x32xf32, #tpu.memory_space<vmem>>, vector<1x32xf32>
    %22 = vector.broadcast %21 : vector<1x32xf32> to vector<8x32xf32>
    %23 = arith.mulf %20, %22 : vector<8x32xf32>
    %c0_11 = arith.constant 0 : index
    %c0_12 = arith.constant 0 : index
    %24 = vector.load %arg5[%c0_11, %c0_12] : memref<1x32xf32, #tpu.memory_space<vmem>>, vector<1x32xf32>
    %25 = vector.broadcast %24 : vector<1x32xf32> to vector<8x32xf32>
    %26 = arith.addf %23, %25 : vector<8x32xf32>
    %27 = arith.truncf %26 : vector<8x32xf32> to vector<8x32xbf16>
    %c0_13 = arith.constant 0 : index
    %c0_14 = arith.constant 0 : index
    %28 = vector.load %arg6[%c0_13, %c0_14] : memref<8x32xbf16, #tpu.memory_space<vmem>>, vector<8x32xbf16>
    tpu.vector_store %arg6[%c0_13, %c0_14], %27 {strides = array<i32>} : memref<8x32xbf16, #tpu.memory_space<vmem>>, vector<8x32xbf16>,
    return
  }
  func.func @transform_0(%arg0: i32) -> (i32, i32) {
    %c0_i32 = arith.constant 0 : i32
    %c0_i32_0 = arith.constant 0 : i32
    return %arg0, %c0_i32 : i32, i32
  }
  func.func @transform_1(%arg0: i32) -> (i32, i32) {
    %c1_i32 = arith.constant 1 : i32
    %c0_i32 = arith.constant 0 : i32
    %0 = arith.cmpi eq, %c1_i32, %c0_i32 : i32
    %c1_i32_0 = arith.constant 1 : i32
    %1 = arith.select %0, %c1_i32_0, %c1_i32 : i32
    %2 = arith.remsi %arg0, %1 : i32
    %c0_i32_1 = arith.constant 0 : i32
    %3 = arith.cmpi ne, %2, %c0_i32_1 : i32
    %c0_i32_2 = arith.constant 0 : i32
    %4 = arith.cmpi slt, %2, %c0_i32_2 : i32
    %c0_i32_3 = arith.constant 0 : i32
    %5 = arith.cmpi slt, %1, %c0_i32_3 : i32
    %6 = arith.xori %4, %5 : i1
    %7 = arith.andi %6, %3 : i1
    %8 = arith.addi %2, %1 : i32
    %9 = arith.select %7, %8, %2 : i32
    %c0_i32_4 = arith.constant 0 : i32
    %c0_i32_5 = arith.constant 0 : i32
    return %9, %c0_i32_4 : i32, i32
  }
  func.func @transform_2(%arg0: i32) -> (i32, i32) {
    %c0_i32 = arith.constant 0 : i32
    %c0_i32_0 = arith.constant 0 : i32
    return %arg0, %c0_i32 : i32, i32
  }
  func.func @transform_3(%arg0: i32) -> (i32, i32) {
    %c0_i32 = arith.constant 0 : i32
    %c0_i32_0 = arith.constant 0 : i32
    %c0_i32_1 = arith.constant 0 : i32
    return %c0_i32, %c0_i32_0 : i32, i32
  }
  func.func @transform_4(%arg0: i32) -> (i32, i32) {
    %c0_i32 = arith.constant 0 : i32
    %c0_i32_0 = arith.constant 0 : i32
    %c0_i32_1 = arith.constant 0 : i32
    return %c0_i32, %c0_i32_0 : i32, i32
  }
  func.func @transform_5(%arg0: i32) -> (i32, i32) {
    %c0_i32 = arith.constant 0 : i32
    %c0_i32_0 = arith.constant 0 : i32
    return %arg0, %c0_i32 : i32, i32
  }
}

</mosaic_0001>

<llo_original>
// kernel: tpu_custom_call.1
$region0: #{tpu_custom_call.1}
  #allocation0 [shape = 'u32[]', space=smem, size = 0x4, offset = 0x4, fixed_abs, tag = 'smem constant byte address 0x4 - core index']
  #allocation1 [shape = 'u32[144,128]{1,0:T(1,128)}', space=vmem, size = 0x12000, scoped, tag = 'internal scratch']
  %s0 = inlined_call_operand.hbm [shape: f32[16,32], index: 0, kind: input, shape index: {}]
  %s1 = inlined_call_operand.hbm [shape: f32[8,32], index: 1, kind: input, shape index: {}]
  %s2 = inlined_call_operand.hbm [shape: f32[16,32], index: 2, kind: input, shape index: {}]
  %s3 = inlined_call_operand.vmem [shape: f32[1,32], index: 3, kind: input, shape index: {}]
  %s4 = inlined_call_operand.vmem [shape: f32[1,32], index: 4, kind: input, shape index: {}]
  %s5 = inlined_call_operand.hbm [shape: bf16[16,32], index: 5, kind: output, shape index: {}]
  %s6 = sld [smem:[#allocation0]]
  $region65: #{tpu_custom_call.1} parent=0
    _
  %s8 = ssub.s32 1, %s6
  %s9 = scalar_select 0, %s8, %s6
  $region1: #{tpu_custom_call.1} parent=0
    #allocation2 [shape = 'u8[8192]{0}', space=vmem, size = 0x2000, scoped, tag = 'input window, operand 0']
    #allocation3 [shape = 's32[2]{0}', space=sflag, size = 0x8, scoped, tag = 'scoped memory for tpu_custom_call.1']
    #allocation4 [shape = 's32[2]{0}', space=sflag, size = 0x8, scoped, tag = 'scoped memory for tpu_custom_call.1']
    #allocation5 [shape = 'u8[4096]{0}', space=vmem, size = 0x1000, scoped, tag = 'input window, operand 1, single buffered']
    #allocation6 [shape = 's32[1]{0}', space=sflag, size = 0x4, scoped, tag = 'scoped memory for tpu_custom_call.1']
    #allocation7 [shape = 'u8[8192]{0}', space=vmem, size = 0x2000, scoped, tag = 'input window, operand 2']
    #allocation8 [shape = 'u8[4096]{0}', space=vmem, size = 0x1000, scoped, tag = 'output window, operand 0']
    %10 = vsyncpa [#allocation3], 0
    %s11 = scalar_lea.sflag [#allocation3], 1
    %12 = vsyncpa %s11, 0
    %13 = vsyncpa [#allocation6], 0
    %14 = vsyncpa [#allocation4], 0
    %s15 = scalar_lea.sflag [#allocation4], 1
    %16 = vsyncpa %s15, 0
    loop: start=0, step=1, limit=4
    $region2: #{tpu_custom_call.1} parent=1 // loop_pre_header
      _
    $region3: #{tpu_custom_call.1} parent=1 // loop_header
      %s18 = sphi 0, %s22
      %p19 = scmp.ge.s32.totalorder %s18, 4
      %s28 = sphi 0, %s30
      %s31 = sphi 0, %s28
      %s32 = sphi 0, %s31
      %s48 = sphi 0, %s32
      %s52 = sphi 0, %s52
      %s54 = sphi 0, %s52
      %s55 = sphi 0, %s54
      %s69 = sphi 0, %s55
      %s75 = sphi 0, %s77
      %s78 = sphi 0, %s75
      %s79 = sphi 0, %s78
      %s95 = sphi 0, %s79
      %s99 = sphi 0, %s99
      %s101 = sphi 0, %s99
      %s102 = sphi 0, %s101
      %s116 = sphi 0, %s102
      %s120 = sphi 0, %s120
      %s122 = sphi 0, %s120
      %s123 = sphi 0, %s122
      %s137 = sphi 0, %s123
      %s143 = sphi 0, %s145
      %s146 = sphi 0, %s143
      %s147 = sphi 0, %s146
      %s163 = sphi 0, %s147
    $region4: #{tpu_custom_call.1} parent=1 // loop_header_branch
      %21 = sbr.rel (%p19) target = $region8
    $region5: #{tpu_custom_call.1} parent=1 // loop_body
      %s23 = ssub.s32 %s18, 1
      %s24 = ssub.s32 %s18, 2
      %s25 = sadd.s32 %s18, 1
      %s26 = ssub.s32 %s18, %s25
      %p27 = scmp.eq.s32.totalorder %s26, 0
      %s29 = sadd.s32 %s28, 1
      %s30 = scalar_select %p27, %s28, %s29
      %p33 = pneg %p27
      %p34 = scmp.eq.s32.totalorder %s18, 1
      %p35 = por %p33, %p34
      %p36 = scmp.ne.s32.totalorder %s28, %s31
      %p37 = scmp.eq.s32.totalorder %s18, 0
      %p38 = por %p36, %p37
      %p39 = scmp.ne.s32.totalorder %s28, %s31
      %p40 = scmp.eq.s32.totalorder %s23, 1
      %p41 = por %p39, %p40
      %p42 = scmp.ne.s32.totalorder %s31, %s32
      %p43 = scmp.eq.s32.totalorder %s23, 0
      %p44 = por %p42, %p43
      %p45 = scmp.ne.s32.totalorder %s31, %s32
      %p46 = scmp.eq.s32.totalorder %s24, 1
      %p47 = por %p45, %p46
      %p49 = scmp.ne.s32.totalorder %s32, %s48
      %p50 = scmp.eq.s32.totalorder %s24, 0
      %p51 = por %p49, %p50
      %s53 = sadd.s32 %s52, 1
      %p56 = scmp.eq.s32.totalorder %s18, 1
      %p57 = scmp.ne.s32.totalorder %s52, %s54
      %p58 = scmp.eq.s32.totalorder %s18, 0
      %p59 = por %p57, %p58
      %p60 = scmp.ne.s32.totalorder %s52, %s54
      %p61 = scmp.eq.s32.totalorder %s23, 1
      %p62 = por %p60, %p61
      %p63 = scmp.ne.s32.totalorder %s54, %s55
      %p64 = scmp.eq.s32.totalorder %s23, 0
      %p65 = por %p63, %p64
      %p66 = scmp.ne.s32.totalorder %s54, %s55
      %p67 = scmp.eq.s32.totalorder %s24, 1
      %p68 = por %p66, %p67
      %p70 = scmp.ne.s32.totalorder %s55, %s69
      %p71 = scmp.eq.s32.totalorder %s24, 0
      %p72 = por %p70, %p71
      %s73 = ssub.s32 %s18, %s25
      %p74 = scmp.eq.s32.totalorder %s73, 0
      %s76 = sadd.s32 %s75, 1
      %s77 = scalar_select %p74, %s75, %s76
      %p80 = pneg %p74
      %p81 = scmp.eq.s32.totalorder %s18, 1
      %p82 = por %p80, %p81
      %p83 = scmp.ne.s32.totalorder %s75, %s78
      %p84 = scmp.eq.s32.totalorder %s18, 0
      %p85 = por %p83, %p84
      %p86 = scmp.ne.s32.totalorder %s75, %s78
      %p87 = scmp.eq.s32.totalorder %s23, 1
      %p88 = por %p86, %p87
      %p89 = scmp.ne.s32.totalorder %s78, %s79
      %p90 = scmp.eq.s32.totalorder %s23, 0
      %p91 = por %p89, %p90
      %p92 = scmp.ne.s32.totalorder %s78, %s79
      %p93 = scmp.eq.s32.totalorder %s24, 1
      %p94 = por %p92, %p93
      %p96 = scmp.ne.s32.totalorder %s79, %s95
      %p97 = scmp.eq.s32.totalorder %s24, 0
      %p98 = por %p96, %p97
      %s100 = sadd.s32 %s99, 1
      %p103 = scmp.eq.s32.totalorder %s18, 1
      %p104 = scmp.ne.s32.totalorder %s99, %s101
      %p105 = scmp.eq.s32.totalorder %s18, 0
      %p106 = por %p104, %p105
      %p107 = scmp.ne.s32.totalorder %s99, %s101
      %p108 = scmp.eq.s32.totalorder %s23, 1
      %p109 = por %p107, %p108
      %p110 = scmp.ne.s32.totalorder %s101, %s102
      %p111 = scmp.eq.s32.totalorder %s23, 0
      %p112 = por %p110, %p111
      %p113 = scmp.ne.s32.totalorder %s101, %s102
      %p114 = scmp.eq.s32.totalorder %s24, 1
      %p115 = por %p113, %p114
      %p117 = scmp.ne.s32.totalorder %s102, %s116
      %p118 = scmp.eq.s32.totalorder %s24, 0
      %p119 = por %p117, %p118
      %s121 = sadd.s32 %s120, 1
      %p124 = scmp.eq.s32.totalorder %s18, 1
      %p125 = scmp.ne.s32.totalorder %s120, %s122
      %p126 = scmp.eq.s32.totalorder %s18, 0
      %p127 = por %p125, %p126
      %p128 = scmp.ne.s32.totalorder %s120, %s122
      %p129 = scmp.eq.s32.totalorder %s23, 1
      %p130 = por %p128, %p129
      %p131 = scmp.ne.s32.totalorder %s122, %s123
      %p132 = scmp.eq.s32.totalorder %s23, 0
      %p133 = por %p131, %p132
      %p134 = scmp.ne.s32.totalorder %s122, %s123
      %p135 = scmp.eq.s32.totalorder %s24, 1
      %p136 = por %p134, %p135
      %p138 = scmp.ne.s32.totalorder %s123, %s137
      %p139 = scmp.eq.s32.totalorder %s24, 0
      %p140 = por %p138, %p139
      %s141 = ssub.s32 %s18, %s25
      %p142 = scmp.eq.s32.totalorder %s141, 0
      %s144 = sadd.s32 %s143, 1
      %s145 = scalar_select %p142, %s143, %s144
      %p148 = pneg %p142
      %p149 = scmp.eq.s32.totalorder %s18, 1
      %p150 = por %p148, %p149
      %p151 = scmp.ne.s32.totalorder %s143, %s146
      %p152 = scmp.eq.s32.totalorder %s18, 0
      %p153 = por %p151, %p152
      %p154 = scmp.ne.s32.totalorder %s143, %s146
      %p155 = scmp.eq.s32.totalorder %s23, 1
      %p156 = por %p154, %p155
      %p157 = scmp.ne.s32.totalorder %s146, %s147
      %p158 = scmp.eq.s32.totalorder %s23, 0
      %p159 = por %p157, %p158
      %p160 = scmp.ne.s32.totalorder %s146, %s147
      %p161 = scmp.eq.s32.totalorder %s24, 1
      %p162 = por %p160, %p161
      %p164 = scmp.ne.s32.totalorder %s147, %s163
      %p165 = scmp.eq.s32.totalorder %s24, 0
      %p166 = por %p164, %p165
      %p167 = scmp.le.s32.totalorder 1, %s18
      %p168 = scmp.lt.s32.totalorder %s18, 3
      %p169 = pnand %p167, %p168
      %p170 = pneg %p169
      // Predicated region
      $region9: #{tpu_custom_call.1} parent=5 // pred_check
        _
      $region10: #{tpu_custom_call.1} parent=5 // pred_check_branch
        %172 = sbr.rel (%p169) target = $region12
      $region11: #{tpu_custom_call.1} parent=5 // pred_region
        %s173 = ssub.s32 %s18, 1
        // Predicated region
        $region13: #{tpu_custom_call.1} parent=11 // pred_check
          %p174 = pneg %p65
        $region14: #{tpu_custom_call.1} parent=11 // pred_check_branch
          %176 = sbr.rel (%p174) target = $region16
        $region15: #{tpu_custom_call.1} parent=11 // pred_region
          %s178 = ssub.s32 128, 128
          %179 = vsyncadd [#allocation6], %s178
          %s181 = sshll.u32 [#allocation5], 4
          %s182 = int_to_ptr.vmem [resolvable:$true] %s181
          %184 = dma.hbm_to_vmem [thread:$0]  %s1, 128, %s182, [#allocation6]
        $region16: #{tpu_custom_call.1} parent=11 // pred_fallthru
          _
        // Predicated region
        $region17: #{tpu_custom_call.1} parent=11 // pred_check
          %p185 = pneg %p112
        $region18: #{tpu_custom_call.1} parent=11 // pred_check_branch
          %187 = sbr.rel (%p185) target = $region20
        $region19: #{tpu_custom_call.1} parent=11 // pred_region
          _
        $region20: #{tpu_custom_call.1} parent=11 // pred_fallthru
          _
        // Predicated region
        $region21: #{tpu_custom_call.1} parent=11 // pred_check
          %p188 = pneg %p133
        $region22: #{tpu_custom_call.1} parent=11 // pred_check_branch
          %190 = sbr.rel (%p188) target = $region24
        $region23: #{tpu_custom_call.1} parent=11 // pred_region
          _
        $region24: #{tpu_custom_call.1} parent=11 // pred_fallthru
          _
      $region12: #{tpu_custom_call.1} parent=5 // pred_fallthru
        _
      %p191 = scmp.lt.s32.totalorder %s18, 2
      // Predicated region
      $region25: #{tpu_custom_call.1} parent=5 // pred_check
        %p192 = pneg %p191
      $region26: #{tpu_custom_call.1} parent=5 // pred_check_branch
        %194 = sbr.rel (%p192) target = $region28
      $region27: #{tpu_custom_call.1} parent=5 // pred_region
        // Predicated region
        $region29: #{tpu_custom_call.1} parent=27 // pred_check
          %p195 = pneg %p38
        $region30: #{tpu_custom_call.1} parent=27 // pred_check_branch
          %197 = sbr.rel (%p195) target = $region32
        $region31: #{tpu_custom_call.1} parent=27 // pred_region
          %s198 = sand.u32 %s18, 1
          %s199 = scalar_lea.sflag [#allocation3], %s198
          %s200 = sand.u32 %s28, 1
          %s201 = smul.addr %s200, 8
          %s202 = scalar_lea.vmem [#allocation2], %s201
          %s204 = ssub.s32 128, 128
          %205 = vsyncadd %s199, %s204
          %s206 = smul.addr %s18, 128
          %s207 = scalar_lea.hbm %s0, %s206
          %s209 = sshll.u32 %s202, 4
          %s210 = int_to_ptr.vmem [resolvable:$true] %s209
          %212 = dma.hbm_to_vmem [thread:$0]  %s207, 128, %s210, %s199
        $region32: #{tpu_custom_call.1} parent=27 // pred_fallthru
          _
        // Predicated region
        $region33: #{tpu_custom_call.1} parent=27 // pred_check
          %p213 = pneg %p85
        $region34: #{tpu_custom_call.1} parent=27 // pred_check_branch
          %215 = sbr.rel (%p213) target = $region36
        $region35: #{tpu_custom_call.1} parent=27 // pred_region
          %s216 = sand.u32 %s18, 1
          %s217 = scalar_lea.sflag [#allocation3], %s216
          %s218 = sand.u32 %s75, 1
          %s219 = smul.addr %s218, 8
          %s220 = scalar_lea.vmem [#allocation7], %s219
          %s222 = ssub.s32 128, 128
          %223 = vsyncadd %s217, %s222
          %s224 = smul.addr %s18, 128
          %s225 = scalar_lea.hbm %s2, %s224
          %s227 = sshll.u32 %s220, 4
          %s228 = int_to_ptr.vmem [resolvable:$true] %s227
          %230 = dma.hbm_to_vmem [thread:$0]  %s225, 128, %s228, %s217
        $region36: #{tpu_custom_call.1} parent=27 // pred_fallthru
          _
      $region28: #{tpu_custom_call.1} parent=5 // pred_fallthru
        _
      %p231 = scmp.le.s32.totalorder 1, %s18
      %p232 = scmp.lt.s32.totalorder %s18, 3
      %p233 = pnand %p231, %p232
      %p234 = pneg %p233
      // Predicated region
      $region37: #{tpu_custom_call.1} parent=5 // pred_check
        _
      $region38: #{tpu_custom_call.1} parent=5 // pred_check_branch
        %236 = sbr.rel (%p233) target = $region40
      $region39: #{tpu_custom_call.1} parent=5 // pred_region
        %s237 = ssub.s32 %s18, 1
        %s238 = sand.u32 %s23, 1
        %s239 = scalar_lea.sflag [#allocation3], %s238
        %s240 = sand.u32 %s31, 1
        %s241 = smul.addr %s240, 8
        %s242 = scalar_lea.vmem [#allocation2], %s241
        // Predicated region
        $region41: #{tpu_custom_call.1} parent=39 // pred_check
          %p243 = pneg %p44
        $region42: #{tpu_custom_call.1} parent=39 // pred_check_branch
          %245 = sbr.rel (%p243) target = $region44
        $region43: #{tpu_custom_call.1} parent=39 // pred_region
          %246 = dma.done %s239, 128
        $region44: #{tpu_custom_call.1} parent=39 // pred_fallthru
          _
        // Predicated region
        $region45: #{tpu_custom_call.1} parent=39 // pred_check
          %p247 = pneg %p65
        $region46: #{tpu_custom_call.1} parent=39 // pred_check_branch
          %249 = sbr.rel (%p247) target = $region48
        $region47: #{tpu_custom_call.1} parent=39 // pred_region
          %250 = dma.done [#allocation6], 128
        $region48: #{tpu_custom_call.1} parent=39 // pred_fallthru
          _
        %s251 = sand.u32 %s23, 1
        %s252 = scalar_lea.sflag [#allocation3], %s251
        %s253 = sand.u32 %s78, 1
        %s254 = smul.addr %s253, 8
        %s255 = scalar_lea.vmem [#allocation7], %s254
        // Predicated region
        $region49: #{tpu_custom_call.1} parent=39 // pred_check
          %p256 = pneg %p91
        $region50: #{tpu_custom_call.1} parent=39 // pred_check_branch
          %258 = sbr.rel (%p256) target = $region52
        $region51: #{tpu_custom_call.1} parent=39 // pred_region
          %259 = dma.done %s252, 128
        $region52: #{tpu_custom_call.1} parent=39 // pred_fallthru
          _
        %s260 = sand.u32 %s23, 1
        %s261 = scalar_lea.sflag [#allocation3], %s260
        %s262 = sand.u32 %s31, 1
        %s263 = smul.addr %s262, 8
        %s264 = scalar_lea.vmem [#allocation2], %s263
        %p265 = pneg %p44
        %p266 = pneg %p41
        %p267 = pneg %p65
        %p268 = pneg %p62
        %s269 = sand.u32 %s23, 1
        %s270 = scalar_lea.sflag [#allocation3], %s269
        %s271 = sand.u32 %s78, 1
        %s272 = smul.addr %s271, 8
        %s273 = scalar_lea.vmem [#allocation7], %s272
        %p274 = pneg %p91
        %p275 = pneg %p88
        %p276 = pneg %p112
        %p277 = pneg %p109
        %p278 = pneg %p133
        %p279 = pneg %p130
        %p280 = pneg %p159
        %p281 = pneg %p156
        %s282 = sand.u32 %s146, 1
        %s283 = scalar_lea.sflag [#allocation4], %s282
        %s284 = sand.u32 %s146, 1
        %s285 = smul.addr %s284, 4
        %s286 = scalar_lea.vmem [#allocation8], %s285
        %v287 = vld [vmem:[%s242] sm:$0xff]
        %v288 = vld [vmem:[#allocation5] sm:$0xff]
        %v289 = vadd.f32 %v287, %v288
        %v290 = vld [vmem:[%s255] sm:$0xff]
        %v291 = vadd.f32 %v289, %v290
        %vm292 = vcmask 261120
        %v293 = vsel %vm292, %v291, 0.0
        %294 = vadd.xlane.f32.xlu0 %v293
        %v295 = vpop.xlane.xlu0 %294
        %v296 = vrcp.pop 32.0
        %v297 = vmul.f32 %v295, %v296
        %v298 = vsub.f32 %v291, %v297
        %v299 = vmul.f32 %v298, %v298
        %v300 = vsel %vm292, %v299, 0.0
        %301 = vadd.xlane.f32.xlu0 %v300
        %v302 = vpop.xlane.xlu0 %301
        %v303 = vmul.f32 %v302, %v296
        %v304 = vadd.f32 %v303, 1e-12
        %v305 = vrsqrt.pop %v304
        %v306 = vmul.f32 %v298, %v305
        %v307 = vld [vmem:[%s3] sm:$0x1]
        %v309 = vlaneseq
        %v310 = vshrl.u32 %v309, 7
        %v311 = vsub.s32 0, %v310
        %v312 = vrot.slane %v307, %v311
        %v314 = vmul.f32 %v306, %v312
        %v315 = vld [vmem:[%s4] sm:$0x1]
        %v317 = vlaneseq
        %v318 = vshrl.u32 %v317, 7
        %v319 = vsub.s32 0, %v318
        %v320 = vrot.slane %v315, %v319
        %v322 = vadd.f32 %v314, %v320
        %v323 = vpack.c.bf16 %v322, %v322
        %vm324 = vcmask 257024
        %325 = vst.msk [vmem:[%s286] sm:$0xf] %vm324, %v323
        %s326 = sand.u32 %s146, 1
        %s327 = scalar_lea.sflag [#allocation4], %s326
        %s328 = sand.u32 %s146, 1
        %s329 = smul.addr %s328, 4
        %s330 = scalar_lea.vmem [#allocation8], %s329
        // Predicated region
        $region53: #{tpu_custom_call.1} parent=39 // pred_check
          %p331 = pneg %p156
        $region54: #{tpu_custom_call.1} parent=39 // pred_check_branch
          %333 = sbr.rel (%p331) target = $region56
        $region55: #{tpu_custom_call.1} parent=39 // pred_region
          %s335 = ssub.s32 64, 64
          %336 = vsyncadd %s327, %s335
          %s337 = smul.addr %s23, 64
          %s338 = scalar_lea.hbm %s5, %s337
          %s340 = sshll.u32 %s330, 4
          %s341 = int_to_ptr.vmem [resolvable:$true] %s340
          %343 = dma.vmem_to_hbm [thread:$0]  %s341, 64, %s338, %s327
        $region56: #{tpu_custom_call.1} parent=39 // pred_fallthru
          _
      $region40: #{tpu_custom_call.1} parent=5 // pred_fallthru
        _
      %p344 = scmp.le.s32.totalorder 2, %s18
      // Predicated region
      $region57: #{tpu_custom_call.1} parent=5 // pred_check
        %p345 = pneg %p344
      $region58: #{tpu_custom_call.1} parent=5 // pred_check_branch
        %347 = sbr.rel (%p345) target = $region60
      $region59: #{tpu_custom_call.1} parent=5 // pred_region
        %s348 = ssub.s32 %s18, 2
        // Predicated region
        $region61: #{tpu_custom_call.1} parent=59 // pred_check
          %p349 = pneg %p162
        $region62: #{tpu_custom_call.1} parent=59 // pred_check_branch
          %351 = sbr.rel (%p349) target = $region64
        $region63: #{tpu_custom_call.1} parent=59 // pred_region
          %s352 = sand.u32 %s147, 1
          %s353 = scalar_lea.sflag [#allocation4], %s352
          %s354 = sand.u32 %s147, 1
          %s355 = smul.addr %s354, 4
          %s356 = scalar_lea.vmem [#allocation8], %s355
          %357 = dma.done %s353, 64
        $region64: #{tpu_custom_call.1} parent=59 // pred_fallthru
          _
      $region60: #{tpu_custom_call.1} parent=5 // pred_fallthru
        _
    $region6: #{tpu_custom_call.1} parent=1 // loop_footer
      %s22 = sadd.s32 1, %s18
    $region7: #{tpu_custom_call.1} parent=1 // loop_footer_branch
      %17 = sbr.rel target = $region3
    $region8: #{tpu_custom_call.1} parent=1 // loop_exit
      _
    %358 = vsyncpa [#allocation3], 1
    %s359 = scalar_lea.sflag [#allocation3], 1
    %360 = vsyncpa %s359, 1
    %361 = vsyncpa [#allocation6], 1
    %362 = vsyncpa [#allocation4], 1
    %s363 = scalar_lea.sflag [#allocation4], 1
    %364 = vsyncpa %s363, 1

</llo_original>
